<compile_context>
chip_gen: v5e
topology: v5e:2x2
jax: 0.10.0
libtpu: 0.0.40
codegen_flags: <defaults>
</compile_context>

<pallas_src>
import jax
import jax.numpy as jnp
from jax.experimental import pallas as pl
from jax.experimental.pallas import tpu as pltpu


def _round_up(n, m):
    return ((n + m - 1) // m) * m


def _audio_mlp_kernel(x_ref, w1_ref, b1_ref, w2_ref, b2_ref, w3_ref, b3_ref, o_ref):
    # fc1 + ReLU  (bf16 inputs, f32 accumulate; bias/ReLU in f32)
    h1 = jnp.dot(x_ref[...], w1_ref[...], preferred_element_type=jnp.float32)
    h1 = jnp.maximum(h1 + b1_ref[...], 0.0)
    # fc2 + ReLU
    h2 = jnp.dot(h1.astype(w2_ref.dtype), w2_ref[...],
                 preferred_element_type=jnp.float32)
    h2 = jnp.maximum(h2 + b2_ref[...], 0.0)
    # fc3 (no activation) -- output lane-padded to 128 wide
    out = jnp.dot(h2.astype(w3_ref.dtype), w3_ref[...],
                  preferred_element_type=jnp.float32) + b3_ref[...]
    o_ref[...] = out.astype(o_ref.dtype)


def audio_mlp_forward(x, params, *, tm=256, compute_dtype=jnp.bfloat16):
    """x: (B, H, W) -- trailing dims flattened like x.view(B, -1)."""
    w1, b1, w2, b2, w3, b3 = params
    B = x.shape[0]
    x_flat = x.reshape(B, -1)
    in_features = x_flat.shape[1]
    num_classes = w3.shape[1]

    # --- lane-pad output dim to a full 128-lane vreg width (zero columns) ---
    n_pad = _round_up(max(num_classes, 1), 128)
    w3p = jnp.zeros((w3.shape[0], n_pad), w3.dtype).at[:, :num_classes].set(w3)
    b3p = jnp.zeros((1, n_pad), b3.dtype).at[:, :num_classes].set(b3)

    # --- batch tiling: pad B to a multiple of the M-tile (>= 8 sublanes).
    #     For tiny batches shrink the tile so we don't stream useless zero rows.
    tm = max(8, min(tm, _round_up(B, 8)))
    b_pad = _round_up(B, tm)
    x_p = jnp.zeros((b_pad, in_features), compute_dtype).at[:B].set(
        x_flat.astype(compute_dtype))

    # bf16 matmul operands, f32 biases.
    w1c, w2c, w3c = (w.astype(compute_dtype) for w in (w1, w2, w3p))
    b1f, b2f, b3f = (b.astype(jnp.float32) for b in (b1, b2, b3p))

    grid = (b_pad // tm,)
    tiled = lambda shape: pl.BlockSpec(shape, lambda i: (i, 0))   # streams per M-tile
    full = lambda shape: pl.BlockSpec(shape, lambda i: (0, 0))    # VMEM-resident

    operands = (x_p, w1c, b1f, w2c, b2f, w3c, b3f)
    flops = 2 * b_pad * (in_features * w1.shape[1]
                         + w1.shape[1] * w2.shape[1]
                         + w2.shape[1] * n_pad)
    bytes_accessed = sum(int(a.size) * a.dtype.itemsize for a in operands) \
        + b_pad * n_pad * 4

    out = pl.pallas_call(
        _audio_mlp_kernel,
        out_shape=jax.ShapeDtypeStruct((b_pad, n_pad), jnp.float32),
        grid=grid,
        in_specs=[
            tiled((tm, in_features)),
            full(w1c.shape), full(b1f.shape),
            full(w2c.shape), full(b2f.shape),
            full(w3c.shape), full(b3f.shape),
        ],
        out_specs=tiled((tm, n_pad)),
        compiler_params=pltpu.CompilerParams(
            dimension_semantics=("parallel",)),
        cost_estimate=pl.CostEstimate(
            flops=flops, transcendentals=0, bytes_accessed=bytes_accessed),
    )(*operands)

    return out[:B, :num_classes]


def init_params(key, in_features, num_classes):
    """Deterministic synthetic params matching nn.Linear shapes.

    PyTorch stores Linear weight as (out, in); we transpose to (in, out) so
    y = x @ W_t + b matches F.linear(x, W, b) = x @ W.T + b exactly.
    """
    dims = [(512, in_features), (128, 512), (num_classes, 128)]
    params = []
    for (out_d, in_d) in dims:
        kw, kb, key = jax.random.split(key, 3)
        bound = 1.0 / jnp.sqrt(in_d)
        w = jax.random.uniform(kw, (out_d, in_d), jnp.float32, -bound, bound)
        b = jax.random.uniform(kb, (out_d,), jnp.float32, -bound, bound)
        params.append(w.T)                    # (in, out) for the kernel
        params.append(b.reshape(1, out_d))    # 2D bias for clean VMEM layout
    return params


def reference_forward(x, params, compute_dtype=jnp.bfloat16):
    """Pure-JAX reference with the same bf16-in / f32-accumulate numerics."""
    w1, b1, w2, b2, w3, b3 = params
    cd = compute_dtype
    xf = x.reshape(x.shape[0], -1)
    h1 = jnp.dot(xf.astype(cd), w1.astype(cd),
                 preferred_element_type=jnp.float32) + b1
    h1 = jnp.maximum(h1, 0.0)
    h2 = jnp.dot(h1.astype(cd), w2.astype(cd),
                 preferred_element_type=jnp.float32) + b2
    h2 = jnp.maximum(h2, 0.0)
    return jnp.dot(h2.astype(cd), w3.astype(cd),
                   preferred_element_type=jnp.float32) + b3


if __name__ == "__main__":
    key = jax.random.PRNGKey(0)
    kx, kp = jax.random.split(key)

    # Small shapes consistent with the module: input_shape=(16, 16), batch=2.
    B, H, W = 2, 16, 16
    num_classes = 2
    in_features = H * W

    x = jax.random.normal(kx, (B, H, W), jnp.float32)
    params = init_params(kp, in_features, num_classes)

    out = audio_mlp_forward(x, params)
    out = jax.block_until_ready(out)

    ref = reference_forward(x, params)
    assert out.shape == (B, num_classes), out.shape
    assert jnp.allclose(out, ref, atol=1e-2, rtol=1e-2), "mismatch vs reference"

    print("KERNEL_OK")
</pallas_src>

<mosaic_0001>
module attributes {stable_mosaic.version = 11 : i64} {
  func.func @_audio_mlp_kernel(%arg0: i32, %arg1: memref<8x256xbf16, #tpu.memory_space<vmem>>, %arg2: memref<256x512xbf16, #tpu.memory_space<vmem>>, %arg3: memref<1x512xf32, #tpu.memory_space<vmem>>, %arg4: memref<512x128xbf16, #tpu.memory_space<vmem>>, %arg5: memref<1x128xf32, #tpu.memory_space<vmem>>, %arg6: memref<128x128xbf16, #tpu.memory_space<vmem>>, %arg7: memref<1x128xf32, #tpu.memory_space<vmem>>, %arg8: memref<8x128xf32, #tpu.memory_space<vmem>>) attributes {dimension_semantics = [#tpu.dimension_semantics<parallel>], iteration_bounds = array<i64: 1>, scalar_prefetch = 0 : i64, scratch_operands = 0 : i64, tpu.core_type = #tpu.core_type<tc>, window_params = [{transform_indices = @transform_0, window_bounds = array<i64: 8, 256>}, {pipeline_mode = #tpu.pipeline_mode<synchronous>, transform_indices = @transform_1, window_bounds = array<i64: 256, 512>}, {pipeline_mode = #tpu.pipeline_mode<synchronous>, transform_indices = @transform_2, window_bounds = array<i64: 1, 512>}, {pipeline_mode = #tpu.pipeline_mode<synchronous>, transform_indices = @transform_3, window_bounds = array<i64: 512, 128>}, {pipeline_mode = #tpu.pipeline_mode<synchronous>, transform_indices = @transform_4, window_bounds = array<i64: 1, 128>}, {pipeline_mode = #tpu.pipeline_mode<synchronous>, transform_indices = @transform_5, window_bounds = array<i64: 128, 128>}, {pipeline_mode = #tpu.pipeline_mode<synchronous>, transform_indices = @transform_6, window_bounds = array<i64: 1, 128>}, {transform_indices = @transform_7, window_bounds = array<i64: 8, 128>}]} {
    %c0 = arith.constant 0 : index
    %c0_0 = arith.constant 0 : index
    %0 = vector.load %arg1[%c0, %c0_0] : memref<8x256xbf16, #tpu.memory_space<vmem>>, vector<8x256xbf16>
    %c0_1 = arith.constant 0 : index
    %c0_2 = arith.constant 0 : index
    %1 = vector.load %arg2[%c0_1, %c0_2] : memref<256x512xbf16, #tpu.memory_space<vmem>>, vector<256x512xbf16>
    %cst = arith.constant dense<0.000000e+00> : vector<8x512xf32>
    %2 = tpu.matmul %0, %1, %cst {dimension_numbers = #tpu.dot_dimension_numbers<[1], [0], [0], [1], [0, 0, 1, 1], [], []>} : vector<8x256xbf16>, vector<256x512xbf16>, vector<8x512xf32> -> vector<8x512xf32>
    %c0_3 = arith.constant 0 : index
    %c0_4 = arith.constant 0 : index
    %3 = vector.load %arg3[%c0_3, %c0_4] : memref<1x512xf32, #tpu.memory_space<vmem>>, vector<1x512xf32>
    %4 = vector.broadcast %3 : vector<1x512xf32> to vector<8x512xf32>
    %5 = arith.addf %2, %4 : vector<8x512xf32>
    %cst_5 = arith.constant 0.000000e+00 : f32
    %6 = vector.broadcast %cst_5 : f32 to vector<8x512xf32>
    %7 = arith.maximumf %5, %6 : vector<8x512xf32>
    %8 = arith.truncf %7 : vector<8x512xf32> to vector<8x512xbf16>
    %c0_6 = arith.constant 0 : index
    %c0_7 = arith.constant 0 : index
    %9 = vector.load %arg4[%c0_6, %c0_7] : memref<512x128xbf16, #tpu.memory_space<vmem>>, vector<512x128xbf16>
    %cst_8 = arith.constant dense<0.000000e+00> : vector<8x128xf32>
    %10 = tpu.matmul %8, %9, %cst_8 {dimension_numbers = #tpu.dot_dimension_numbers<[1], [0], [0], [1], [0, 0, 1, 1], [], []>} : vector<8x512xbf16>, vector<512x128xbf16>, vector<8x128xf32> -> vector<8x128xf32>
    %c0_9 = arith.constant 0 : index
    %c0_10 = arith.constant 0 : index
    %11 = vector.load %arg5[%c0_9, %c0_10] : memref<1x128xf32, #tpu.memory_space<vmem>>, vector<1x128xf32>
    %12 = vector.broadcast %11 : vector<1x128xf32> to vector<8x128xf32>
    %13 = arith.addf %10, %12 : vector<8x128xf32>
    %cst_11 = arith.constant 0.000000e+00 : f32
    %14 = vector.broadcast %cst_11 : f32 to vector<8x128xf32>
    %15 = arith.maximumf %13, %14 : vector<8x128xf32>
    %16 = arith.truncf %15 : vector<8x128xf32> to vector<8x128xbf16>
    %c0_12 = arith.constant 0 : index
    %c0_13 = arith.constant 0 : index
    %17 = vector.load %arg6[%c0_12, %c0_13] : memref<128x128xbf16, #tpu.memory_space<vmem>>, vector<128x128xbf16>
    %cst_14 = arith.constant dense<0.000000e+00> : vector<8x128xf32>
    %18 = tpu.matmul %16, %17, %cst_14 {dimension_numbers = #tpu.dot_dimension_numbers<[1], [0], [0], [1], [0, 0, 1, 1], [], []>} : vector<8x128xbf16>, vector<128x128xbf16>, vector<8x128xf32> -> vector<8x128xf32>
    %c0_15 = arith.constant 0 : index
    %c0_16 = arith.constant 0 : index
    %19 = vector.load %arg7[%c0_15, %c0_16] : memref<1x128xf32, #tpu.memory_space<vmem>>, vector<1x128xf32>
    %20 = vector.broadcast %19 : vector<1x128xf32> to vector<8x128xf32>
    %21 = arith.addf %18, %20 : vector<8x128xf32>
    %c0_17 = arith.constant 0 : index
    %c0_18 = arith.constant 0 : index
    %22 = vector.load %arg8[%c0_17, %c0_18] : memref<8x128xf32, #tpu.memory_space<vmem>>, vector<8x128xf32>
    tpu.vector_store %arg8[%c0_17, %c0_18], %21 {strides = array<i32>} : memref<8x128xf32, #tpu.memory_space<vmem>>, vector<8x128xf32>,
    return
  }
  func.func @transform_0(%arg0: i32) -> (i32, i32) {
    %c0_i32 = arith.constant 0 : i32
    %c0_i32_0 = arith.constant 0 : i32
    return %arg0, %c0_i32 : i32, i32
  }
  func.func @transform_1(%arg0: i32) -> (i32, i32) {
    %c0_i32 = arith.constant 0 : i32
    %c0_i32_0 = arith.constant 0 : i32
    %c0_i32_1 = arith.constant 0 : i32
    return %c0_i32, %c0_i32_0 : i32, i32
  }
  func.func @transform_2(%arg0: i32) -> (i32, i32) {
    %c0_i32 = arith.constant 0 : i32
    %c0_i32_0 = arith.constant 0 : i32
    %c0_i32_1 = arith.constant 0 : i32
    return %c0_i32, %c0_i32_0 : i32, i32
  }
  func.func @transform_3(%arg0: i32) -> (i32, i32) {
    %c0_i32 = arith.constant 0 : i32
    %c0_i32_0 = arith.constant 0 : i32
    %c0_i32_1 = arith.constant 0 : i32
    return %c0_i32, %c0_i32_0 : i32, i32
  }
  func.func @transform_4(%arg0: i32) -> (i32, i32) {
    %c0_i32 = arith.constant 0 : i32
    %c0_i32_0 = arith.constant 0 : i32
    %c0_i32_1 = arith.constant 0 : i32
    return %c0_i32, %c0_i32_0 : i32, i32
  }
  func.func @transform_5(%arg0: i32) -> (i32, i32) {
    %c0_i32 = arith.constant 0 : i32
    %c0_i32_0 = arith.constant 0 : i32
    %c0_i32_1 = arith.constant 0 : i32
    return %c0_i32, %c0_i32_0 : i32, i32
  }
  func.func @transform_6(%arg0: i32) -> (i32, i32) {
    %c0_i32 = arith.constant 0 : i32
    %c0_i32_0 = arith.constant 0 : i32
    %c0_i32_1 = arith.constant 0 : i32
    return %c0_i32, %c0_i32_0 : i32, i32
  }
  func.func @transform_7(%arg0: i32) -> (i32, i32) {
    %c0_i32 = arith.constant 0 : i32
    %c0_i32_0 = arith.constant 0 : i32
    return %arg0, %c0_i32 : i32, i32
  }
}

</mosaic_0001>

<llo_original>
// kernel: tpu_custom_call.1
$region0: #{tpu_custom_call.1}
  #allocation0 [shape = 'u32[]', space=smem, size = 0x4, offset = 0x4, fixed_abs, tag = 'smem constant byte address 0x4 - core index']
  #allocation1 [shape = 'u32[72,128]{1,0:T(1,128)}', space=vmem, size = 0x9000, scoped, tag = 'internal scratch']
  %s0 = inlined_call_operand.hbm [shape: bf16[8,256], index: 0, kind: input, shape index: {}]
  %s1 = inlined_call_operand.hbm [shape: bf16[256,512], index: 1, kind: input, shape index: {}]
  %s2 = inlined_call_operand.hbm [shape: f32[1,512], index: 2, kind: input, shape index: {}]
  %s3 = inlined_call_operand.hbm [shape: bf16[512,128], index: 3, kind: input, shape index: {}]
  %s4 = inlined_call_operand.vmem [shape: f32[1,128], index: 4, kind: input, shape index: {}]
  %s5 = inlined_call_operand.hbm [shape: bf16[128,128], index: 5, kind: input, shape index: {}]
  %s6 = inlined_call_operand.vmem [shape: f32[1,128], index: 6, kind: input, shape index: {}]
  %s7 = inlined_call_operand.hbm [shape: f32[8,128], index: 7, kind: output, shape index: {}]
  %s8 = sld [smem:[#allocation0]]
  $region58: #{tpu_custom_call.1} parent=0
    _
  %s10 = ssub.s32 1, %s8
  %s11 = scalar_select 0, %s10, %s8
  $region1: #{tpu_custom_call.1} parent=0
    #allocation2 [shape = 'u8[4096]{0}', space=vmem, size = 0x1000, scoped, tag = 'input window, operand 0, single buffered']
    #allocation3 [shape = 's32[1]{0}', space=sflag, size = 0x4, scoped, tag = 'scoped memory for tpu_custom_call.1']
    #allocation4 [shape = 's32[1]{0}', space=sflag, size = 0x4, scoped, tag = 'scoped memory for tpu_custom_call.1']
    #allocation5 [shape = 'u8[262144]{0}', space=vmem, size = 0x40000, scoped, tag = 'input window, operand 1, single buffered']
    #allocation6 [shape = 's32[1]{0}', space=sflag, size = 0x4, scoped, tag = 'scoped memory for tpu_custom_call.1']
    #allocation7 [shape = 'u8[2048]{0}', space=vmem, size = 0x800, scoped, tag = 'input window, operand 2, single buffered']
    #allocation8 [shape = 'u8[131072]{0}', space=vmem, size = 0x20000, scoped, tag = 'input window, operand 3, single buffered']
    #allocation9 [shape = 's32[1]{0}', space=sflag, size = 0x4, scoped, tag = 'scoped memory for tpu_custom_call.1']
    #allocation10 [shape = 'u8[32768]{0}', space=vmem, size = 0x8000, scoped, tag = 'input window, operand 5, single buffered']
    #allocation11 [shape = 'u8[4096]{0}', space=vmem, size = 0x1000, scoped, tag = 'output window, operand 0, single buffered']
    %12 = vsyncpa [#allocation3], 0
    %13 = vsyncpa [#allocation6], 0
    %14 = vsyncpa [#allocation9], 0
    %15 = vsyncpa [#allocation4], 0
    // Predicated region
    $region2: #{tpu_custom_call.1} parent=1 // pred_check
      _
    $region3: #{tpu_custom_call.1} parent=1 // pred_check_branch
      %17 = sbr.rel (0) target = $region5
    $region4: #{tpu_custom_call.1} parent=1 // pred_region
      %19 = vsyncadd [#allocation3], 0
      %s21 = sshll.u32 %s0, 4
      %s22 = int_to_ptr.hbm [resolvable:$true] %s21
      %s23 = sshll.u32 [#allocation2], 4
      %s24 = int_to_ptr.vmem [resolvable:$true] %s23
      %26 = dma.hbm_to_vmem [thread:$0]  %s22, 128, %s24, [#allocation3]
    $region5: #{tpu_custom_call.1} parent=1 // pred_fallthru
      _
    // Predicated region
    $region6: #{tpu_custom_call.1} parent=1 // pred_check
      _
    $region7: #{tpu_custom_call.1} parent=1 // pred_check_branch
      %28 = sbr.rel (0) target = $region9
    $region8: #{tpu_custom_call.1} parent=1 // pred_region
      %30 = vsyncadd [#allocation6], 0
      %s31 = sshll.u32 %s1, 4
      %s32 = int_to_ptr.hbm [resolvable:$true] %s31
      %s33 = sshll.u32 [#allocation5], 4
      %s34 = int_to_ptr.vmem [resolvable:$true] %s33
      %39 = dma.hbm_to_vmem [thread:$0]  %s32, 8192, %s34, [#allocation6], 256, 256, 16
    $region9: #{tpu_custom_call.1} parent=1 // pred_fallthru
      _
    // Predicated region
    $region10: #{tpu_custom_call.1} parent=1 // pred_check
      _
    $region11: #{tpu_custom_call.1} parent=1 // pred_check_branch
      %41 = sbr.rel (0) target = $region13
    $region12: #{tpu_custom_call.1} parent=1 // pred_region
      %43 = vsyncadd [#allocation6], 0
      %s45 = sshll.u32 %s2, 4
      %s46 = int_to_ptr.hbm [resolvable:$true] %s45
      %s47 = sshll.u32 [#allocation7], 4
      %s48 = int_to_ptr.vmem [resolvable:$true] %s47
      %50 = dma.hbm_to_vmem [thread:$0]  %s46, 64, %s48, [#allocation6]
    $region13: #{tpu_custom_call.1} parent=1 // pred_fallthru
      _
    // Predicated region
    $region14: #{tpu_custom_call.1} parent=1 // pred_check
      _
    $region15: #{tpu_custom_call.1} parent=1 // pred_check_branch
      %52 = sbr.rel (0) target = $region17
    $region16: #{tpu_custom_call.1} parent=1 // pred_region
      %54 = vsyncadd [#allocation9], 0
      %s55 = sshll.u32 %s3, 4
      %s56 = int_to_ptr.hbm [resolvable:$true] %s55
      %s57 = sshll.u32 [#allocation8], 4
      %s58 = int_to_ptr.vmem [resolvable:$true] %s57
      %63 = dma.hbm_to_vmem [thread:$0]  %s56, 4096, %s58, [#allocation9], 64, 64, 4
    $region17: #{tpu_custom_call.1} parent=1 // pred_fallthru
      _
    // Predicated region
    $region18: #{tpu_custom_call.1} parent=1 // pred_check
      _
    $region19: #{tpu_custom_call.1} parent=1 // pred_check_branch
      %65 = sbr.rel (0) target = $region21
    $region20: #{tpu_custom_call.1} parent=1 // pred_region
      _
    $region21: #{tpu_custom_call.1} parent=1 // pred_fallthru
      _
    // Predicated region
    $region22: #{tpu_custom_call.1} parent=1 // pred_check
      _
    $region23: #{tpu_custom_call.1} parent=1 // pred_check_branch
      %67 = sbr.rel (0) target = $region25
    $region24: #{tpu_custom_call.1} parent=1 // pred_region
      %69 = vsyncadd [#allocation9], 0
      %s70 = sshll.u32 %s5, 4
      %s71 = int_to_ptr.hbm [resolvable:$true] %s70
      %s72 = sshll.u32 [#allocation10], 4
      %s73 = int_to_ptr.vmem [resolvable:$true] %s72
      %78 = dma.hbm_to_vmem [thread:$0]  %s71, 1024, %s73, [#allocation9], 64, 64, 4
    $region25: #{tpu_custom_call.1} parent=1 // pred_fallthru
      _
    // Predicated region
    $region26: #{tpu_custom_call.1} parent=1 // pred_check
      _
    $region27: #{tpu_custom_call.1} parent=1 // pred_check_branch
      %80 = sbr.rel (0) target = $region29
    $region28: #{tpu_custom_call.1} parent=1 // pred_region
      _
    $region29: #{tpu_custom_call.1} parent=1 // pred_fallthru
      _
    // Predicated region
    $region30: #{tpu_custom_call.1} parent=1 // pred_check
      _
    $region31: #{tpu_custom_call.1} parent=1 // pred_check_branch
      %82 = sbr.rel (0) target = $region33
    $region32: #{tpu_custom_call.1} parent=1 // pred_region
      %84 = dma.done [#allocation3], 128
    $region33: #{tpu_custom_call.1} parent=1 // pred_fallthru
      _
    // Predicated region
    $region34: #{tpu_custom_call.1} parent=1 // pred_check
      _
    $region35: #{tpu_custom_call.1} parent=1 // pred_check_branch
      %86 = sbr.rel (0) target = $region37
    $region36: #{tpu_custom_call.1} parent=1 // pred_region
      %88 = dma.done [#allocation6], 8192
    $region37: #{tpu_custom_call.1} parent=1 // pred_fallthru
      _
    // Predicated region
    $region38: #{tpu_custom_call.1} parent=1 // pred_check
      _
    $region39: #{tpu_custom_call.1} parent=1 // pred_check_branch
      %90 = sbr.rel (0) target = $region41
    $region40: #{tpu_custom_call.1} parent=1 // pred_region
      %92 = dma.done [#allocation6], 64
    $region41: #{tpu_custom_call.1} parent=1 // pred_fallthru
      _
    // Predicated region
    $region42: #{tpu_custom_call.1} parent=1 // pred_check
      _
    $region43: #{tpu_custom_call.1} parent=1 // pred_check_branch
      %94 = sbr.rel (0) target = $region45
    $region44: #{tpu_custom_call.1} parent=1 // pred_region
      %96 = dma.done [#allocation9], 4096
    $region45: #{tpu_custom_call.1} parent=1 // pred_fallthru
      _
    // Predicated region
    $region46: #{tpu_custom_call.1} parent=1 // pred_check
      _
    $region47: #{tpu_custom_call.1} parent=1 // pred_check_branch
      %98 = sbr.rel (0) target = $region49
    $region48: #{tpu_custom_call.1} parent=1 // pred_region
      %100 = dma.done [#allocation9], 1024
    $region49: #{tpu_custom_call.1} parent=1 // pred_fallthru
      _
    %v101 = vld [vmem:[#allocation2] sm:$0xff]
    %v102 = vld [vmem:[#allocation5] sm:$0xff]
    %v103 = vld [vmem:[#allocation5 + $0x8] sm:$0xff]
    %v104 = vld [vmem:[#allocation5 + $0x10] sm:$0xff]
    %v105 = vld [vmem:[#allocation5 + $0x18] sm:$0xff]
    %v106 = vld [vmem:[#allocation5 + $0x20] sm:$0xff]
    %v107 = vld [vmem:[#allocation5 + $0x28] sm:$0xff]
    %v108 = vld [vmem:[#allocation5 + $0x30] sm:$0xff]
    %v109 = vld [vmem:[#allocation5 + $0x38] sm:$0xff]
    %v110 = vld [vmem:[#allocation5 + $0x40] sm:$0xff]
    %v111 = vld [vmem:[#allocation5 + $0x48] sm:$0xff]
    %v112 = vld [vmem:[#allocation5 + $0x50] sm:$0xff]
    %v113 = vld [vmem:[#allocation5 + $0x58] sm:$0xff]
    %v114 = vld [vmem:[#allocation5 + $0x60] sm:$0xff]
    %v115 = vld [vmem:[#allocation5 + $0x68] sm:$0xff]
    %v116 = vld [vmem:[#allocation5 + $0x70] sm:$0xff]
    %v117 = vld [vmem:[#allocation5 + $0x78] sm:$0xff]
    %v118 = vld [vmem:[#allocation5 + $0x80] sm:$0xff]
    %v119 = vld [vmem:[#allocation5 + $0x88] sm:$0xff]
    %v120 = vld [vmem:[#allocation5 + $0x90] sm:$0xff]
    %v121 = vld [vmem:[#allocation5 + $0x98] sm:$0xff]
    %v122 = vld [vmem:[#allocation5 + $0xa0] sm:$0xff]
    %v123 = vld [vmem:[#allocation5 + $0xa8] sm:$0xff]
    %v124 = vld [vmem:[#allocation5 + $0xb0] sm:$0xff]
    %v125 = vld [vmem:[#allocation5 + $0xb8] sm:$0xff]
    %v126 = vld [vmem:[#allocation5 + $0xc0] sm:$0xff]
    %v127 = vld [vmem:[#allocation5 + $0xc8] sm:$0xff]
    %v128 = vld [vmem:[#allocation5 + $0xd0] sm:$0xff]
    %v129 = vld [vmem:[#allocation5 + $0xd8] sm:$0xff]
    %v130 = vld [vmem:[#allocation5 + $0xe0] sm:$0xff]
    %v131 = vld [vmem:[#allocation5 + $0xe8] sm:$0xff]
    %v132 = vld [vmem:[#allocation5 + $0xf0] sm:$0xff]
    %v133 = vld [vmem:[#allocation5 + $0xf8] sm:$0xff]
    %v134 = vld [vmem:[#allocation5 + $0x100] sm:$0xff]
    %v135 = vld [vmem:[#allocation5 + $0x108] sm:$0xff]
    %v136 = vld [vmem:[#allocation5 + $0x110] sm:$0xff]
    %v137 = vld [vmem:[#allocation5 + $0x118] sm:$0xff]
    %v138 = vld [vmem:[#allocation5 + $0x120] sm:$0xff]
    %v139 = vld [vmem:[#allocation5 + $0x128] sm:$0xff]
    %v140 = vld [vmem:[#allocation5 + $0x130] sm:$0xff]
    %v141 = vld [vmem:[#allocation5 + $0x138] sm:$0xff]
    %v142 = vld [vmem:[#allocation5 + $0x140] sm:$0xff]
    %v143 = vld [vmem:[#allocation5 + $0x148] sm:$0xff]
    %v144 = vld [vmem:[#allocation5 + $0x150] sm:$0xff]
    %v145 = vld [vmem:[#allocation5 + $0x158] sm:$0xff]
    %v146 = vld [vmem:[#allocation5 + $0x160] sm:$0xff]
    %v147 = vld [vmem:[#allocation5 + $0x168] sm:$0xff]
    %v148 = vld [vmem:[#allocation5 + $0x170] sm:$0xff]
    %v149 = vld [vmem:[#allocation5 + $0x178] sm:$0xff]
    %v150 = vld [vmem:[#allocation5 + $0x180] sm:$0xff]
    %v151 = vld [vmem:[#allocation5 + $0x188] sm:$0xff]
    %v152 = vld [vmem:[#allocation5 + $0x190] sm:$0xff]
    %v153 = vld [vmem:[#allocation5 + $0x198] sm:$0xff]
    %v154 = vld [vmem:[#allocation5 + $0x1a0] sm:$0xff]
    %v155 = vld [vmem:[#allocation5 + $0x1a8] sm:$0xff]
    %v156 = vld [vmem:[#allocation5 + $0x1b0] sm:$0xff]
    %v157 = vld [vmem:[#allocation5 + $0x1b8] sm:$0xff]
    %v158 = vld [vmem:[#allocation5 + $0x1c0] sm:$0xff]
    %v159 = vld [vmem:[#allocation5 + $0x1c8] sm:$0xff]
    %v160 = vld [vmem:[#allocation5 + $0x1d0] sm:$0xff]
    %v161 = vld [vmem:[#allocation5 + $0x1d8] sm:$0xff]
    %v162 = vld [vmem:[#allocation5 + $0x1e0] sm:$0xff]
    %v163 = vld [vmem:[#allocation5 + $0x1e8] sm:$0xff]
    %v164 = vld [vmem:[#allocation5 + $0x1f0] sm:$0xff]
    %v165 = vld [vmem:[#allocation5 + $0x1f8] sm:$0xff]
    %v166 = vld [vmem:[#allocation7] sm:$0xf]
    %v168 = vperm.slane %v166, 0
    %v169 = vperm.slane %v166, 1
    %v170 = vperm.slane %v166, 2
    %v171 = vperm.slane %v166, 3
    %v177 = vunpack.c.l.b16 %v101
    %v178 = vunpack.c.h.b16 %v101
    %v179 = vpack.c.b16 %v177, %v177
    %v180 = vpack.c.b16 %v178, %v178
    %v247 = vunpack.c.l.b16 %v102
    %v248 = vunpack.c.h.b16 %v102
    %v249 = vunpack.c.l.b16 %v103
    %v250 = vunpack.c.h.b16 %v103
    %v251 = vunpack.c.l.b16 %v104
    %v252 = vunpack.c.h.b16 %v104
    %v253 = vunpack.c.l.b16 %v105
    %v254 = vunpack.c.h.b16 %v105
    %v255 = vunpack.c.l.b16 %v106
    %v256 = vunpack.c.h.b16 %v106
    %v257 = vunpack.c.l.b16 %v107
    %v258 = vunpack.c.h.b16 %v107
    %v259 = vunpack.c.l.b16 %v108
    %v260 = vunpack.c.h.b16 %v108
    %v261 = vunpack.c.l.b16 %v109
    %v262 = vunpack.c.h.b16 %v109
    %v263 = vunpack.c.l.b16 %v110
    %v264 = vunpack.c.h.b16 %v110
    %v265 = vunpack.c.l.b16 %v111
    %v266 = vunpack.c.h.b16 %v111
    %v267 = vunpack.c.l.b16 %v112
    %v268 = vunpack.c.h.b16 %v112
    %v269 = vunpack.c.l.b16 %v113
    %v270 = vunpack.c.h.b16 %v113
    %v271 = vunpack.c.l.b16 %v114
    %v272 = vunpack.c.h.b16 %v114
    %v273 = vunpack.c.l.b16 %v115
    %v274 = vunpack.c.h.b16 %v115
    %v275 = vunpack.c.l.b16 %v116
    %v276 = vunpack.c.h.b16 %v116
    %v277 = vunpack.c.l.b16 %v117
    %v278 = vunpack.c.h.b16 %v117
    %v279 = vunpack.c.l.b16 %v118
    %v280 = vunpack.c.h.b16 %v118
    %v281 = vunpack.c.l.b16 %v119
    %v282 = vunpack.c.h.b16 %v119
    %v283 = vunpack.c.l.b16 %v120
    %v284 = vunpack.c.h.b16 %v120
    %v285 = vunpack.c.l.b16 %v121
    %v286 = vunpack.c.h.b16 %v121
    %v287 = vunpack.c.l.b16 %v122
    %v288 = vunpack.c.h.b16 %v122
    %v289 = vunpack.c.l.b16 %v123
    %v290 = vunpack.c.h.b16 %v123
    %v291 = vunpack.c.l.b16 %v124
    %v292 = vunpack.c.h.b16 %v124
    %v293 = vunpack.c.l.b16 %v125
    %v294 = vunpack.c.h.b16 %v125
    %v295 = vunpack.c.l.b16 %v126
    %v296 = vunpack.c.h.b16 %v126
    %v297 = vunpack.c.l.b16 %v127
    %v298 = vunpack.c.h.b16 %v127
    %v299 = vunpack.c.l.b16 %v128
    %v300 = vunpack.c.h.b16 %v128
    %v301 = vunpack.c.l.b16 %v129
    %v302 = vunpack.c.h.b16 %v129
    %v303 = vunpack.c.l.b16 %v130
    %v304 = vunpack.c.h.b16 %v130
    %v305 = vunpack.c.l.b16 %v131
    %v306 = vunpack.c.h.b16 %v131
    %v307 = vunpack.c.l.b16 %v132
    %v308 = vunpack.c.h.b16 %v132
    %v309 = vunpack.c.l.b16 %v133
    %v310 = vunpack.c.h.b16 %v133
    %v311 = vunpack.c.l.b16 %v134
    %v312 = vunpack.c.h.b16 %v134
    %v313 = vunpack.c.l.b16 %v135
    %v314 = vunpack.c.h.b16 %v135
    %v315 = vunpack.c.l.b16 %v136
    %v316 = vunpack.c.h.b16 %v136
    %v317 = vunpack.c.l.b16 %v137
    %v318 = vunpack.c.h.b16 %v137
    %v319 = vunpack.c.l.b16 %v138
    %v320 = vunpack.c.h.b16 %v138
    %v321 = vunpack.c.l.b16 %v139
    %v322 = vunpack.c.h.b16 %v139
    %v323 = vunpack.c.l.b16 %v140
    %v324 = vunpack.c.h.b16 %v140
    %v325 = vunpack.c.l.b16 %v141
    %v326 = vunpack.c.h.b16 %v141
    %v327 = vunpack.c.l.b16 %v142
    %v328 = vunpack.c.h.b16 %v142
    %v329 = vunpack.c.l.b16 %v143
    %v330 = vunpack.c.h.b16 %v143
    %v331 = vunpack.c.l.b16 %v144
    %v332 = vunpack.c.h.b16 %v144
    %v333 = vunpack.c.l.b16 %v145
    %v334 = vunpack.c.h.b16 %v145
    %v335 = vunpack.c.l.b16 %v146
    %v336 = vunpack.c.h.b16 %v146
    %v337 = vunpack.c.l.b16 %v147
    %v338 = vunpack.c.h.b16 %v147
    %v339 = vunpack.c.l.b16 %v148
    %v340 = vunpack.c.h.b16 %v148
    %v341 = vunpack.c.l.b16 %v149
    %v342 = vunpack.c.h.b16 %v149
    %v343 = vunpack.c.l.b16 %v150
    %v344 = vunpack.c.h.b16 %v150
    %v345 = vunpack.c.l.b16 %v151
    %v346 = vunpack.c.h.b16 %v151
    %v347 = vunpack.c.l.b16 %v152
    %v348 = vunpack.c.h.b16 %v152
    %v349 = vunpack.c.l.b16 %v153
    %v350 = vunpack.c.h.b16 %v153
    %v351 = vunpack.c.l.b16 %v154
    %v352 = vunpack.c.h.b16 %v154
    %v353 = vunpack.c.l.b16 %v155
    %v354 = vunpack.c.h.b16 %v155
    %v355 = vunpack.c.l.b16 %v156
    %v356 = vunpack.c.h.b16 %v156
    %v357 = vunpack.c.l.b16 %v157
    %v358 = vunpack.c.h.b16 %v157
    %v359 = vunpack.c.l.b16 %v158
    %v360 = vunpack.c.h.b16 %v158
    %v361 = vunpack.c.l.b16 %v159
    %v362 = vunpack.c.h.b16 %v159
    %v363 = vunpack.c.l.b16 %v160
    %v364 = vunpack.c.h.b16 %v160
    %v365 = vunpack.c.l.b16 %v161
    %v366 = vunpack.c.h.b16 %v161
    %v367 = vunpack.c.l.b16 %v162
    %v368 = vunpack.c.h.b16 %v162
    %v369 = vunpack.c.l.b16 %v163
    %v370 = vunpack.c.h.b16 %v163
    %v371 = vunpack.c.l.b16 %v164
    %v372 = vunpack.c.h.b16 %v164
    %v373 = vunpack.c.l.b16 %v165
    %v374 = vunpack.c.h.b16 %v165
    %v375 = vpack.c.b16 %v251, %v247
    %v376 = vpack.c.b16 %v252, %v248
    %v377 = vpack.c.b16 %v253, %v249
    %v378 = vpack.c.b16 %v254, %v250
    %v379 = vpack.c.b16 %v259, %v255
    %v380 = vpack.c.b16 %v260, %v256
    %v381 = vpack.c.b16 %v261, %v257
    %v382 = vpack.c.b16 %v262, %v258
    %v383 = vpack.c.b16 %v267, %v263
    %v384 = vpack.c.b16 %v268, %v264
    %v385 = vpack.c.b16 %v269, %v265
    %v386 = vpack.c.b16 %v270, %v266
    %v387 = vpack.c.b16 %v275, %v271
    %v388 = vpack.c.b16 %v276, %v272
    %v389 = vpack.c.b16 %v277, %v273
    %v390 = vpack.c.b16 %v278, %v274
    %v391 = vpack.c.b16 %v283, %v279
    %v392 = vpack.c.b16 %v284, %v280
    %v393 = vpack.c.b16 %v285, %v281
    %v394 = vpack.c.b16 %v286, %v282
    %v395 = vpack.c.b16 %v291, %v287
    %v396 = vpack.c.b16 %v292, %v288
    %v397 = vpack.c.b16 %v293, %v289
    %v398 = vpack.c.b16 %v294, %v290
    %v399 = vpack.c.b16 %v299, %v295
    %v400 = vpack.c.b16 %v300, %v296
    %v401 = vpack.c.b16 %v301, %v297
    %v402 = vpack.c.b16 %v302, %v298
    %v403 = vpack.c.b16 %v307, %v303
    %v404 = vpack.c.b16 %v308, %v304
    %v405 = vpack.c.b16 %v309, %v305
    %v406 = vpack.c.b16 %v310, %v306
    %v407 = vpack.c.b16 %v315, %v311
    %v408 = vpack.c.b16 %v316, %v312
    %v409 = vpack.c.b16 %v317, %v313
    %v410 = vpack.c.b16 %v318, %v314
    %v411 = vpack.c.b16 %v323, %v319
    %v412 = vpack.c.b16 %v324, %v320
    %v413 = vpack.c.b16 %v325, %v321
    %v414 = vpack.c.b16 %v326, %v322
    %v415 = vpack.c.b16 %v331, %v327
    %v416 = vpack.c.b16 %v332, %v328
    %v417 = vpack.c.b16 %v333, %v329
    %v418 = vpack.c.b16 %v334, %v330
    %v419 = vpack.c.b16 %v339, %v335
    %v420 = vpack.c.b16 %v340, %v336
    %v421 = vpack.c.b16 %v341, %v337
    %v422 = vpack.c.b16 %v342, %v338
    %v423 = vpack.c.b16 %v347, %v343
    %v424 = vpack.c.b16 %v348, %v344
    %v425 = vpack.c.b16 %v349, %v345
    %v426 = vpack.c.b16 %v350, %v346
    %v427 = vpack.c.b16 %v355, %v351
    %v428 = vpack.c.b16 %v356, %v352
    %v429 = vpack.c.b16 %v357, %v353
    %v430 = vpack.c.b16 %v358, %v354
    %v431 = vpack.c.b16 %v363, %v359
    %v432 = vpack.c.b16 %v364, %v360
    %v433 = vpack.c.b16 %v365, %v361
    %v434 = vpack.c.b16 %v366, %v362
    %v435 = vpack.c.b16 %v371, %v367
    %v436 = vpack.c.b16 %v372, %v368
    %v437 = vpack.c.b16 %v373, %v369
    %v438 = vpack.c.b16 %v374, %v370
    %503 = vmatpush.bf16.msra.mxu0 %v403
    %504 = vmatpush.bf16.msra.mxu0 %v399
    %505 = vmatpush.bf16.msra.mxu0 %v395
    %506 = vmatpush.bf16.msra.mxu0 %v391
    %507 = vmatpush.bf16.msra.mxu0 %v387
    %508 = vmatpush.bf16.msra.mxu0 %v383
    %509 = vmatpush.bf16.msra.mxu0 %v379
    %510 = vmatpush.bf16.msra.mxu0 %v375
    %511 = vmatmul.bf16.gmra.mxu0 %v179
    %v512 = vpop.f32.mrf.mxu0
    %v513 = vadd.f32 %v168, %v512
    %v514 = vpop.f32.mrf.mxu0
    %515 = vdwg.mxu0
    %516 = vmatpush.bf16.msra.mxu0 %v435
    %517 = vmatpush.bf16.msra.mxu0 %v431
    %518 = vmatpush.bf16.msra.mxu0 %v427
    %519 = vmatpush.bf16.msra.mxu0 %v423
    %520 = vmatpush.bf16.msra.mxu0 %v419
    %521 = vmatpush.bf16.msra.mxu0 %v415
    %522 = vmatpush.bf16.msra.mxu0 %v411
    %523 = vmatpush.bf16.msra.mxu0 %v407
    %524 = vmatmul.bf16.gmra.mxu0 %v180
    %v525 = vpop.f32.mrf.mxu0
    %v526 = vadd.f32 %v513, %v525
    %v527 = vpop.f32.mrf.mxu0
    %528 = vdwg.mxu0
    %529 = vmatpush.bf16.msra.mxu0 %v404
    %530 = vmatpush.bf16.msra.mxu0 %v400
    %531 = vmatpush.bf16.msra.mxu0 %v396
    %532 = vmatpush.bf16.msra.mxu0 %v392
    %533 = vmatpush.bf16.msra.mxu0 %v388
    %534 = vmatpush.bf16.msra.mxu0 %v384
    %535 = vmatpush.bf16.msra.mxu0 %v380
    %536 = vmatpush.bf16.msra.mxu0 %v376
    %537 = vmatmul.bf16.gmra.mxu0 %v179
    %v538 = vpop.f32.mrf.mxu0
    %v539 = vadd.f32 %v169, %v538
    %v540 = vpop.f32.mrf.mxu0
    %541 = vdwg.mxu0
    %542 = vmatpush.bf16.msra.mxu0 %v436
    %543 = vmatpush.bf16.msra.mxu0 %v432
    %544 = vmatpush.bf16.msra.mxu0 %v428
    %545 = vmatpush.bf16.msra.mxu0 %v424
    %546 = vmatpush.bf16.msra.mxu0 %v420
    %547 = vmatpush.bf16.msra.mxu0 %v416
    %548 = vmatpush.bf16.msra.mxu0 %v412
    %549 = vmatpush.bf16.msra.mxu0 %v408
    %550 = vmatmul.bf16.gmra.mxu0 %v180
    %v551 = vpop.f32.mrf.mxu0
    %v552 = vadd.f32 %v539, %v551
    %v553 = vpop.f32.mrf.mxu0
    %554 = vdwg.mxu0
    %555 = vmatpush.bf16.msra.mxu0 %v405
    %556 = vmatpush.bf16.msra.mxu0 %v401
    %557 = vmatpush.bf16.msra.mxu0 %v397
    %558 = vmatpush.bf16.msra.mxu0 %v393
    %559 = vmatpush.bf16.msra.mxu0 %v389
    %560 = vmatpush.bf16.msra.mxu0 %v385
    %561 = vmatpush.bf16.msra.mxu0 %v381
    %562 = vmatpush.bf16.msra.mxu0 %v377
    %563 = vmatmul.bf16.gmra.mxu0 %v179
    %v564 = vpop.f32.mrf.mxu0
    %v565 = vadd.f32 %v170, %v564
    %v566 = vpop.f32.mrf.mxu0
    %567 = vdwg.mxu0
    %568 = vmatpush.bf16.msra.mxu0 %v437
    %569 = vmatpush.bf16.msra.mxu0 %v433
    %570 = vmatpush.bf16.msra.mxu0 %v429
    %571 = vmatpush.bf16.msra.mxu0 %v425
    %572 = vmatpush.bf16.msra.mxu0 %v421
    %573 = vmatpush.bf16.msra.mxu0 %v417
    %574 = vmatpush.bf16.msra.mxu0 %v413
    %575 = vmatpush.bf16.msra.mxu0 %v409
    %576 = vmatmul.bf16.gmra.mxu0 %v180
    %v577 = vpop.f32.mrf.mxu0
    %v578 = vadd.f32 %v565, %v577
    %v579 = vpop.f32.mrf.mxu0
    %580 = vdwg.mxu0
    %581 = vmatpush.bf16.msra.mxu0 %v406
    %582 = vmatpush.bf16.msra.mxu0 %v402
    %583 = vmatpush.bf16.msra.mxu0 %v398
    %584 = vmatpush.bf16.msra.mxu0 %v394
    %585 = vmatpush.bf16.msra.mxu0 %v390
    %586 = vmatpush.bf16.msra.mxu0 %v386
    %587 = vmatpush.bf16.msra.mxu0 %v382
    %588 = vmatpush.bf16.msra.mxu0 %v378
    %589 = vmatmul.bf16.gmra.mxu0 %v179
    %v590 = vpop.f32.mrf.mxu0
    %v591 = vadd.f32 %v171, %v590
    %v592 = vpop.f32.mrf.mxu0
    %593 = vdwg.mxu0
    %594 = vmatpush.bf16.msra.mxu0 %v438
    %595 = vmatpush.bf16.msra.mxu0 %v434
    %596 = vmatpush.bf16.msra.mxu0 %v430
    %597 = vmatpush.bf16.msra.mxu0 %v426
    %598 = vmatpush.bf16.msra.mxu0 %v422
    %599 = vmatpush.bf16.msra.mxu0 %v418
    %600 = vmatpush.bf16.msra.mxu0 %v414
    %601 = vmatpush.bf16.msra.mxu0 %v410
    %602 = vmatmul.bf16.gmra.mxu0 %v180
    %v603 = vpop.f32.mrf.mxu0
    %v604 = vadd.f32 %v591, %v603
    %v605 = vpop.f32.mrf.mxu0
    %606 = vdwg.mxu0
    %v607 = vmax.f32 %v526, 0.0
    %v608 = vmax.f32 %v552, 0.0
    %v609 = vmax.f32 %v578, 0.0
    %v610 = vmax.f32 %v604, 0.0
    %v611 = vpack.c.bf16 %v607, %v607
    %v612 = vpack.c.bf16 %v608, %v608
    %v613 = vpack.c.bf16 %v609, %v609
    %v614 = vpack.c.bf16 %v610, %v610
    %v615 = vld [vmem:[#allocation8] sm:$0xf]
    %v616 = vld [vmem:[#allocation8 + $0x4] sm:$0xf]
    %v617 = vld [vmem:[#allocation8 + $0x8] sm:$0xf]
    %v618 = vld [vmem:[#allocation8 + $0xc] sm:$0xf]
    %v619 = vld [vmem:[#allocation8 + $0x10] sm:$0xf]
    %v620 = vld [vmem:[#allocation8 + $0x14] sm:$0xf]
    %v621 = vld [vmem:[#allocation8 + $0x18] sm:$0xf]
    %v622 = vld [vmem:[#allocation8 + $0x1c] sm:$0xf]
    %v623 = vld [vmem:[#allocation8 + $0x20] sm:$0xf]
    %v624 = vld [vmem:[#allocation8 + $0x24] sm:$0xf]
    %v625 = vld [vmem:[#allocation8 + $0x28] sm:$0xf]
    %v626 = vld [vmem:[#allocation8 + $0x2c] sm:$0xf]
    %v627 = vld [vmem:[#allocation8 + $0x30] sm:$0xf]
    %v628 = vld [vmem:[#allocation8 + $0x34] sm:$0xf]
    %v629 = vld [vmem:[#allocation8 + $0x38] sm:$0xf]
    %v630 = vld [vmem:[#allocation8 + $0x3c] sm:$0xf]
    %v631 = vld [vmem:[#allocation8 + $0x40] sm:$0xf]
    %v632 = vld [vmem:[#allocation8 + $0x44] sm:$0xf]
    %v633 = vld [vmem:[#allocation8 + $0x48] sm:$0xf]
    %v634 = vld [vmem:[#allocation8 + $0x4c] sm:$0xf]
    %v635 = vld [vmem:[#allocation8 + $0x50] sm:$0xf]
    %v636 = vld [vmem:[#allocation8 + $0x54] sm:$0xf]
    %v637 = vld [vmem:[#allocation8 + $0x58] sm:$0xf]
    %v638 = vld [vmem:[#allocation8 + $0x5c] sm:$0xf]
    %v639 = vld [vmem:[#allocation8 + $0x60] sm:$0xf]
    %v640 = vld [vmem:[#allocation8 + $0x64] sm:$0xf]
    %v641 = vld [vmem:[#allocation8 + $0x68] sm:$0xf]
    %v642 = vld [vmem:[#allocation8 + $0x6c] sm:$0xf]
    %v643 = vld [vmem:[#allocation8 + $0x70] sm:$0xf]
    %v644 = vld [vmem:[#allocation8 + $0x74] sm:$0xf]
    %v645 = vld [vmem:[#allocation8 + $0x78] sm:$0xf]
    %v646 = vld [vmem:[#allocation8 + $0x7c] sm:$0xf]
    %v647 = vld [vmem:[#allocation8 + $0x80] sm:$0xf]
    %v648 = vld [vmem:[#allocation8 + $0x84] sm:$0xf]
    %v649 = vld [vmem:[#allocation8 + $0x88] sm:$0xf]
    %v650 = vld [vmem:[#allocation8 + $0x8c] sm:$0xf]
    %v651 = vld [vmem:[#allocation8 + $0x90] sm:$0xf]
    %v652 = vld [vmem:[#allocation8 + $0x94] sm:$0xf]
    %v653 = vld [vmem:[#allocation8 + $0x98] sm:$0xf]
    %v654 = vld [vmem:[#allocation8 + $0x9c] sm:$0xf]
    %v655 = vld [vmem:[#allocation8 + $0xa0] sm:$0xf]
    %v656 = vld [vmem:[#allocation8 + $0xa4] sm:$0xf]
    %v657 = vld [vmem:[#allocation8 + $0xa8] sm:$0xf]
    %v658 = vld [vmem:[#allocation8 + $0xac] sm:$0xf]
    %v659 = vld [vmem:[#allocation8 + $0xb0] sm:$0xf]
    %v660 = vld [vmem:[#allocation8 + $0xb4] sm:$0xf]
    %v661 = vld [vmem:[#allocation8 + $0xb8] sm:$0xf]
    %v662 = vld [vmem:[#allocation8 + $0xbc] sm:$0xf]
    %v663 = vld [vmem:[#allocation8 + $0xc0] sm:$0xf]
    %v664 = vld [vmem:[#allocation8 + $0xc4] sm:$0xf]
    %v665 = vld [vmem:[#allocation8 + $0xc8] sm:$0xf]
    %v666 = vld [vmem:[#allocation8 + $0xcc] sm:$0xf]
    %v667 = vld [vmem:[#allocation8 + $0xd0] sm:$0xf]
    %v668 = vld [vmem:[#allocation8 + $0xd4] sm:$0xf]
    %v669 = vld [vmem:[#allocation8 + $0xd8] sm:$0xf]
    %v670 = vld [vmem:[#allocation8 + $0xdc] sm:$0xf]
    %v671 = vld [vmem:[#allocation8 + $0xe0] sm:$0xf]
    %v672 = vld [vmem:[#allocation8 + $0xe4] sm:$0xf]
    %v673 = vld [vmem:[#allocation8 + $0xe8] sm:$0xf]
    %v674 = vld [vmem:[#allocation8 + $0xec] sm:$0xf]
    %v675 = vld [vmem:[#allocation8 + $0xf0] sm:$0xf]
    %v676 = vld [vmem:[#allocation8 + $0xf4] sm:$0xf]
    %v677 = vld [vmem:[#allocation8 + $0xf8] sm:$0xf]
    %v678 = vld [vmem:[#allocation8 + $0xfc] sm:$0xf]
    %v679 = vld [vmem:[%s4] sm:$0x1]
    %v681 = vperm.slane %v679, 0
    %v747 = vunpack.c.l.b16 %v615
    %v748 = vunpack.c.l.b16 %v616
    %v749 = vunpack.c.l.b16 %v617
    %v750 = vunpack.c.l.b16 %v618
    %v751 = vunpack.c.l.b16 %v619
    %v752 = vunpack.c.l.b16 %v620
    %v753 = vunpack.c.l.b16 %v621
    %v754 = vunpack.c.l.b16 %v622
    %v755 = vunpack.c.l.b16 %v623
    %v756 = vunpack.c.l.b16 %v624
    %v757 = vunpack.c.l.b16 %v625
    %v758 = vunpack.c.l.b16 %v626
    %v759 = vunpack.c.l.b16 %v627
    %v760 = vunpack.c.l.b16 %v628
    %v761 = vunpack.c.l.b16 %v629
    %v762 = vunpack.c.l.b16 %v630
    %v763 = vunpack.c.l.b16 %v631
    %v764 = vunpack.c.l.b16 %v632
    %v765 = vunpack.c.l.b16 %v633
    %v766 = vunpack.c.l.b16 %v634
    %v767 = vunpack.c.l.b16 %v635
    %v768 = vunpack.c.l.b16 %v636
    %v769 = vunpack.c.l.b16 %v637
    %v770 = vunpack.c.l.b16 %v638
    %v771 = vunpack.c.l.b16 %v639
    %v772 = vunpack.c.l.b16 %v640
    %v773 = vunpack.c.l.b16 %v641
    %v774 = vunpack.c.l.b16 %v642
    %v775 = vunpack.c.l.b16 %v643
    %v776 = vunpack.c.l.b16 %v644
    %v777 = vunpack.c.l.b16 %v645
    %v778 = vunpack.c.l.b16 %v646
    %v779 = vunpack.c.l.b16 %v647
    %v780 = vunpack.c.l.b16 %v648
    %v781 = vunpack.c.l.b16 %v649
    %v782 = vunpack.c.l.b16 %v650
    %v783 = vunpack.c.l.b16 %v651
    %v784 = vunpack.c.l.b16 %v652
    %v785 = vunpack.c.l.b16 %v653
    %v786 = vunpack.c.l.b16 %v654
    %v787 = vunpack.c.l.b16 %v655
    %v788 = vunpack.c.l.b16 %v656
    %v789 = vunpack.c.l.b16 %v657
    %v790 = vunpack.c.l.b16 %v658
    %v791 = vunpack.c.l.b16 %v659
    %v792 = vunpack.c.l.b16 %v660
    %v793 = vunpack.c.l.b16 %v661
    %v794 = vunpack.c.l.b16 %v662
    %v795 = vunpack.c.l.b16 %v663
    %v796 = vunpack.c.l.b16 %v664
    %v797 = vunpack.c.l.b16 %v665
    %v798 = vunpack.c.l.b16 %v666
    %v799 = vunpack.c.l.b16 %v667
    %v800 = vunpack.c.l.b16 %v668
    %v801 = vunpack.c.l.b16 %v669
    %v802 = vunpack.c.l.b16 %v670
    %v803 = vunpack.c.l.b16 %v671
    %v804 = vunpack.c.l.b16 %v672
    %v805 = vunpack.c.l.b16 %v673
    %v806 = vunpack.c.l.b16 %v674
    %v807 = vunpack.c.l.b16 %v675
    %v808 = vunpack.c.l.b16 %v676
    %v809 = vunpack.c.l.b16 %v677
    %v810 = vunpack.c.l.b16 %v678
    %v811 = vpack.c.b16 %v748, %v747
    %v812 = vpack.c.b16 %v750, %v749
    %v813 = vpack.c.b16 %v752, %v751
    %v814 = vpack.c.b16 %v754, %v753
    %v815 = vpack.c.b16 %v756, %v755
    %v816 = vpack.c.b16 %v758, %v757
    %v817 = vpack.c.b16 %v760, %v759
    %v818 = vpack.c.b16 %v762, %v761
    %v819 = vpack.c.b16 %v764, %v763
    %v820 = vpack.c.b16 %v766, %v765
    %v821 = vpack.c.b16 %v768, %v767
    %v822 = vpack.c.b16 %v770, %v769
    %v823 = vpack.c.b16 %v772, %v771
    %v824 = vpack.c.b16 %v774, %v773
    %v825 = vpack.c.b16 %v776, %v775
    %v826 = vpack.c.b16 %v778, %v777
    %v827 = vpack.c.b16 %v780, %v779
    %v828 = vpack.c.b16 %v782, %v781
    %v829 = vpack.c.b16 %v784, %v783
    %v830 = vpack.c.b16 %v786, %v785
    %v831 = vpack.c.b16 %v788, %v787
    %v832 = vpack.c.b16 %v790, %v789
    %v833 = vpack.c.b16 %v792, %v791
    %v834 = vpack.c.b16 %v794, %v793
    %v835 = vpack.c.b16 %v796, %v795
    %v836 = vpack.c.b16 %v798, %v797
    %v837 = vpack.c.b16 %v800, %v799
    %v838 = vpack.c.b16 %v802, %v801
    %v839 = vpack.c.b16 %v804, %v803
    %v840 = vpack.c.b16 %v806, %v805
    %v841 = vpack.c.b16 %v808, %v807
    %v842 = vpack.c.b16 %v810, %v809
    %875 = vmatpush.bf16.msra.mxu0 %v818
    %876 = vmatpush.bf16.msra.mxu0 %v817
    %877 = vmatpush.bf16.msra.mxu0 %v816
    %878 = vmatpush.bf16.msra.mxu0 %v815
    %879 = vmatpush.bf16.msra.mxu0 %v814
    %880 = vmatpush.bf16.msra.mxu0 %v813
    %881 = vmatpush.bf16.msra.mxu0 %v812
    %882 = vmatpush.bf16.msra.mxu0 %v811
    %883 = vmatmul.bf16.gmra.mxu0 %v611
    %v884 = vpop.f32.mrf.mxu0
    %v885 = vadd.f32 %v681, %v884
    %v886 = vpop.f32.mrf.mxu0
    %887 = vdwg.mxu0
    %888 = vmatpush.bf16.msra.mxu0 %v826
    %889 = vmatpush.bf16.msra.mxu0 %v825
    %890 = vmatpush.bf16.msra.mxu0 %v824
    %891 = vmatpush.bf16.msra.mxu0 %v823
    %892 = vmatpush.bf16.msra.mxu0 %v822
    %893 = vmatpush.bf16.msra.mxu0 %v821
    %894 = vmatpush.bf16.msra.mxu0 %v820
    %895 = vmatpush.bf16.msra.mxu0 %v819
    %896 = vmatmul.bf16.gmra.mxu0 %v612
    %v897 = vpop.f32.mrf.mxu0
    %v898 = vadd.f32 %v885, %v897
    %v899 = vpop.f32.mrf.mxu0
    %900 = vdwg.mxu0
    %901 = vmatpush.bf16.msra.mxu0 %v834
    %902 = vmatpush.bf16.msra.mxu0 %v833
    %903 = vmatpush.bf16.msra.mxu0 %v832
    %904 = vmatpush.bf16.msra.mxu0 %v831
    %905 = vmatpush.bf16.msra.mxu0 %v830
    %906 = vmatpush.bf16.msra.mxu0 %v829
    %907 = vmatpush.bf16.msra.mxu0 %v828
    %908 = vmatpush.bf16.msra.mxu0 %v827
    %909 = vmatmul.bf16.gmra.mxu0 %v613
    %v910 = vpop.f32.mrf.mxu0
    %v911 = vadd.f32 %v898, %v910
    %v912 = vpop.f32.mrf.mxu0
    %913 = vdwg.mxu0
    %914 = vmatpush.bf16.msra.mxu0 %v842
    %915 = vmatpush.bf16.msra.mxu0 %v841
    %916 = vmatpush.bf16.msra.mxu0 %v840
    %917 = vmatpush.bf16.msra.mxu0 %v839
    %918 = vmatpush.bf16.msra.mxu0 %v838
    %919 = vmatpush.bf16.msra.mxu0 %v837
    %920 = vmatpush.bf16.msra.mxu0 %v836
    %921 = vmatpush.bf16.msra.mxu0 %v835
    %922 = vmatmul.bf16.gmra.mxu0 %v614
    %v923 = vpop.f32.mrf.mxu0
    %v924 = vadd.f32 %v911, %v923
    %v925 = vpop.f32.mrf.mxu0
    %926 = vdwg.mxu0
    %v927 = vmax.f32 %v924, 0.0
    %v928 = vpack.c.bf16 %v927, %v927
    %v929 = vld [vmem:[#allocation10] sm:$0xf]
    %v930 = vld [vmem:[#allocation10 + $0x4] sm:$0xf]
    %v931 = vld [vmem:[#allocation10 + $0x8] sm:$0xf]
    %v932 = vld [vmem:[#allocation10 + $0xc] sm:$0xf]
    %v933 = vld [vmem:[#allocation10 + $0x10] sm:$0xf]
    %v934 = vld [vmem:[#allocation10 + $0x14] sm:$0xf]
    %v935 = vld [vmem:[#allocation10 + $0x18] sm:$0xf]
    %v936 = vld [vmem:[#allocation10 + $0x1c] sm:$0xf]
    %v937 = vld [vmem:[#allocation10 + $0x20] sm:$0xf]
    %v938 = vld [vmem:[#allocation10 + $0x24] sm:$0xf]
    %v939 = vld [vmem:[#allocation10 + $0x28] sm:$0xf]
    %v940 = vld [vmem:[#allocation10 + $0x2c] sm:$0xf]
    %v941 = vld [vmem:[#allocation10 + $0x30] sm:$0xf]
    %v942 = vld [vmem:[#allocation10 + $0x34] sm:$0xf]
    %v943 = vld [vmem:[#allocation10 + $0x38] sm:$0xf]
    %v944 = vld [vmem:[#allocation10 + $0x3c] sm:$0xf]
    %v945 = vld [vmem:[%s6] sm:$0x1]
    %v947 = vperm.slane %v945, 0
    %v965 = vunpack.c.l.b16 %v929
    %v966 = vunpack.c.l.b16 %v930
    %v967 = vunpack.c.l.b16 %v931
    %v968 = vunpack.c.l.b16 %v932
    %v969 = vunpack.c.l.b16 %v933
    %v970 = vunpack.c.l.b16 %v934
    %v971 = vunpack.c.l.b16 %v935
    %v972 = vunpack.c.l.b16 %v936
    %v973 = vunpack.c.l.b16 %v937
    %v974 = vunpack.c.l.b16 %v938
    %v975 = vunpack.c.l.b16 %v939
    %v976 = vunpack.c.l.b16 %v940
    %v977 = vunpack.c.l.b16 %v941
    %v978 = vunpack.c.l.b16 %v942
    %v979 = vunpack.c.l.b16 %v943
    %v980 = vunpack.c.l.b16 %v944
    %v981 = vpack.c.b16 %v966, %v965
    %v982 = vpack.c.b16 %v968, %v967
    %v983 = vpack.c.b16 %v970, %v969
    %v984 = vpack.c.b16 %v972, %v971
    %v985 = vpack.c.b16 %v974, %v973
    %v986 = vpack.c.b16 %v976, %v975
    %v987 = vpack.c.b16 %v978, %v977
    %v988 = vpack.c.b16 %v980, %v979
    %997 = vmatpush.bf16.msra.mxu0 %v988
    %998 = vmatpush.bf16.msra.mxu0 %v987
    %999 = vmatpush.bf16.msra.mxu0 %v986
    %1000 = vmatpush.bf16.msra.mxu0 %v985
    %1001 = vmatpush.bf16.msra.mxu0 %v984
    %1002 = vmatpush.bf16.msra.mxu0 %v983
    %1003 = vmatpush.bf16.msra.mxu0 %v982
    %1004 = vmatpush.bf16.msra.mxu0 %v981
    %1005 = vmatmul.bf16.gmra.mxu0 %v928
    %v1006 = vpop.f32.mrf.mxu0
    %v1007 = vadd.f32 %v947, %v1006
    %v1008 = vpop.f32.mrf.mxu0
    %1009 = vdwg.mxu0
    %1010 = vst [vmem:[#allocation11] sm:$0xff] %v1007
    // Predicated region
    $region50: #{tpu_custom_call.1} parent=1 // pred_check
      _
    $region51: #{tpu_custom_call.1} parent=1 // pred_check_branch
      %1012 = sbr.rel (0) target = $region53
    $region52: #{tpu_custom_call.1} parent=1 // pred_region
      %1014 = vsyncadd [#allocation4], 0
      %s1016 = sshll.u32 [#allocation11], 4
      %s1017 = int_to_ptr.vmem [resolvable:$true] %s1016
      %s1018 = sshll.u32 %s7, 4
      %s1019 = int_to_ptr.hbm [resolvable:$true] %s1018
      %1021 = dma.vmem_to_hbm [thread:$0]  %s1017, 128, %s1019, [#allocation4]
    $region53: #{tpu_custom_call.1} parent=1 // pred_fallthru
      _
    // Predicated region
    $region54: #{tpu_custom_call.1} parent=1 // pred_check
      _
    $region55: #{tpu_custom_call.1} parent=1 // pred_check_branch
      %1023 = sbr.rel (0) target = $region57
    $region56: #{tpu_custom_call.1} parent=1 // pred_region
      %1025 = dma.done [#allocation4], 128
    $region57: #{tpu_custom_call.1} parent=1 // pred_fallthru
      _
    %1026 = vsyncpa [#allocation3], 1
    %1027 = vsyncpa [#allocation6], 1
    %1028 = vsyncpa [#allocation9], 1
    %1029 = vsyncpa [#allocation4], 1

</llo_original>
